<compile_context>
chip_gen: v5e
topology: v5e:2x2
jax: 0.10.0
libtpu: 0.0.40
codegen_flags: <defaults>
</compile_context>

<pallas_src>
import functools

import jax
import jax.numpy as jnp
from jax.experimental import pallas as pl
from jax.experimental.pallas import tpu as pltpu


def _round_up(x, m):
    return (x + m - 1) // m * m


def _head_kernel(x_ref, w_ref, b_ref, o_ref, *, inv_window):
    # x_ref: (TN, HW, C)  lane axis = C (lane-dense)
    # w_ref: (C, A_pad)   b_ref: (1, A_pad) f32   o_ref: (TN, A_pad)
    x = x_ref[...].astype(jnp.float32)            # pool accumulation in f32
    pooled = jnp.sum(x, axis=-2) * inv_window     # AvgPool3d(1,7,7) -> (TN, C)
    logits = jnp.dot(pooled.astype(w_ref.dtype), w_ref[...],
                     preferred_element_type=jnp.float32)  # MXU, f32 acc
    o_ref[...] = (logits + b_ref[...]).astype(o_ref.dtype)


def i3d_recognition_head(x, weight, bias, *, block_rows=None,
                         vmem_budget_bytes=24 * 1024 * 1024):
    """I3D recognition head forward.

    x: (N, C, D, H, W) with (D, H, W) == (1, 7, 7)   (PyTorch NCDHW)
    weight: (A, C), bias: (A,)                        (PyTorch nn.Linear layout)
    Returns logits of shape (N, A).
    """
    N, C, D, H, W = x.shape
    A = weight.shape[0]
    HW = D * H * W
    assert (D, H, W) == (1, 7, 7), "AvgPool3d(1,7,7) requires (D,H,W)=(1,7,7)"

    out_dtype = jnp.promote_types(x.dtype, weight.dtype)

    # Lane-dense layout: pool window on sublanes, channels on lanes.
    x_l = jnp.transpose(x.reshape(N, C, HW), (0, 2, 1))          # (N, HW, C)

    # Pad output channels to a multiple of 128 for unmasked lane-dense stores.
    A_pad = _round_up(A, 128)
    w_t = jnp.zeros((C, A_pad), dtype=weight.dtype).at[:, :A].set(weight.T)
    b_r = jnp.zeros((1, A_pad), dtype=jnp.float32).at[:, :A].set(
        bias.astype(jnp.float32))

    # Batch tile: double-buffered x block must fit the VMEM budget; multiple
    # of 8 (sublane rule on the output tile). Conservative budget also fits
    # v7x's smaller 64 MiB VMEM.
    x_itemsize = jnp.dtype(x.dtype).itemsize
    per_row = HW * C * x_itemsize * 2                   # x2 for double buffer
    if block_rows is None:
        tn = max(8, min(256, (vmem_budget_bytes // max(per_row, 1)) // 8 * 8))
    else:
        tn = max(8, _round_up(block_rows, 8))
    tn = min(tn, _round_up(N, 8))
    N_pad = _round_up(N, tn)
    if N_pad != N:
        x_l = jnp.pad(x_l, ((0, N_pad - N), (0, 0), (0, 0)))

    grid = (N_pad // tn,)
    kernel = functools.partial(_head_kernel, inv_window=1.0 / HW)

    cost = pl.CostEstimate(
        flops=2 * N_pad * C * A_pad + N_pad * HW * C,
        transcendentals=0,
        bytes_accessed=(N_pad * HW * C * x_itemsize
                        + C * A_pad * jnp.dtype(weight.dtype).itemsize
                        + N_pad * A_pad * jnp.dtype(out_dtype).itemsize),
    )

    out = pl.pallas_call(
        kernel,
        out_shape=jax.ShapeDtypeStruct((N_pad, A_pad), out_dtype),
        grid_spec=pltpu.PrefetchScalarGridSpec(
            num_scalar_prefetch=0,
            grid=grid,
            in_specs=[
                pl.BlockSpec((tn, HW, C), lambda i: (i, 0, 0)),   # x tile
                pl.BlockSpec((C, A_pad), lambda i: (0, 0)),       # weights stay
                pl.BlockSpec((1, A_pad), lambda i: (0, 0)),       # bias stays
            ],
            out_specs=pl.BlockSpec((tn, A_pad), lambda i: (i, 0)),
        ),
        compiler_params=pltpu.CompilerParams(
            dimension_semantics=("parallel",),   # megacore sharding on v7x
        ),
        cost_estimate=cost,
    )(x_l, w_t, b_r)

    return out[:N, :A]


if __name__ == "__main__":
    # Small, forward-consistent demo shapes: batch=2, in_dim=32, action_num=8,
    # spatial exactly (D,H,W)=(1,7,7) as the module's squeezes require.
    N, C, A = 2, 32, 8
    D, H, W = 1, 7, 7

    key = jax.random.PRNGKey(0)
    kx, kw, kb = jax.random.split(key, 3)

    x = jax.random.normal(kx, (N, C, D, H, W), dtype=jnp.float32)
    # Linear params in PyTorch layout: weight (A, C), bias (A,).
    bound = 1.0 / jnp.sqrt(jnp.float32(C))
    weight = jax.random.uniform(kw, (A, C), minval=-bound, maxval=bound,
                                dtype=jnp.float32)
    bias = jax.random.uniform(kb, (A,), minval=-bound, maxval=bound,
                              dtype=jnp.float32)

    logits = i3d_recognition_head(x, weight, bias)
    jax.block_until_ready(logits)

    # Pure-JAX reference for correctness.
    ref = jnp.mean(x.reshape(N, C, -1), axis=-1) @ weight.T + bias
    assert logits.shape == (N, A)
    assert jnp.allclose(logits, ref, atol=1e-5, rtol=1e-5)

    print("KERNEL_OK")
</pallas_src>

<mosaic_0001>
module attributes {stable_mosaic.version = 11 : i64} {
  func.func @_head_kernel(%arg0: i32, %arg1: memref<8x49x32xf32, #tpu.memory_space<vmem>>, %arg2: memref<32x128xf32, #tpu.memory_space<vmem>>, %arg3: memref<1x128xf32, #tpu.memory_space<vmem>>, %arg4: memref<8x128xf32, #tpu.memory_space<vmem>>) attributes {dimension_semantics = [#tpu.dimension_semantics<parallel>], iteration_bounds = array<i64: 1>, scalar_prefetch = 0 : i64, scratch_operands = 0 : i64, tpu.core_type = #tpu.core_type<tc>, window_params = [{transform_indices = @transform_0, window_bounds = array<i64: 8, 49, 32>}, {pipeline_mode = #tpu.pipeline_mode<synchronous>, transform_indices = @transform_1, window_bounds = array<i64: 32, 128>}, {pipeline_mode = #tpu.pipeline_mode<synchronous>, transform_indices = @transform_2, window_bounds = array<i64: 1, 128>}, {transform_indices = @transform_3, window_bounds = array<i64: 8, 128>}]} {
    %c0 = arith.constant 0 : index
    %c0_0 = arith.constant 0 : index
    %c0_1 = arith.constant 0 : index
    %0 = vector.load %arg1[%c0, %c0_0, %c0_1] : memref<8x49x32xf32, #tpu.memory_space<vmem>>, vector<8x49x32xf32>
    %cst = arith.constant dense<0.000000e+00> : vector<8x32xf32>
    %1 = vector.multi_reduction <add>, %0, %cst [1] : vector<8x49x32xf32> to vector<8x32xf32>
    %cst_2 = arith.constant 0.0204081628 : f32
    %2 = vector.broadcast %cst_2 : f32 to vector<8x32xf32>
    %3 = arith.mulf %1, %2 : vector<8x32xf32>
    %c0_3 = arith.constant 0 : index
    %c0_4 = arith.constant 0 : index
    %4 = vector.load %arg2[%c0_3, %c0_4] : memref<32x128xf32, #tpu.memory_space<vmem>>, vector<32x128xf32>
    %cst_5 = arith.constant dense<0.000000e+00> : vector<8x128xf32>
    %5 = tpu.matmul %3, %4, %cst_5 {dimension_numbers = #tpu.dot_dimension_numbers<[1], [0], [0], [1], [0, 0, 1, 1], [], []>} : vector<8x32xf32>, vector<32x128xf32>, vector<8x128xf32> -> vector<8x128xf32>
    %c0_6 = arith.constant 0 : index
    %c0_7 = arith.constant 0 : index
    %6 = vector.load %arg3[%c0_6, %c0_7] : memref<1x128xf32, #tpu.memory_space<vmem>>, vector<1x128xf32>
    %7 = vector.broadcast %6 : vector<1x128xf32> to vector<8x128xf32>
    %8 = arith.addf %5, %7 : vector<8x128xf32>
    %c0_8 = arith.constant 0 : index
    %c0_9 = arith.constant 0 : index
    %9 = vector.load %arg4[%c0_8, %c0_9] : memref<8x128xf32, #tpu.memory_space<vmem>>, vector<8x128xf32>
    tpu.vector_store %arg4[%c0_8, %c0_9], %8 {strides = array<i32>} : memref<8x128xf32, #tpu.memory_space<vmem>>, vector<8x128xf32>,
    return
  }
  func.func @transform_0(%arg0: i32) -> (i32, i32, i32) {
    %c0_i32 = arith.constant 0 : i32
    %c0_i32_0 = arith.constant 0 : i32
    %c0_i32_1 = arith.constant 0 : i32
    return %arg0, %c0_i32, %c0_i32_0 : i32, i32, i32
  }
  func.func @transform_1(%arg0: i32) -> (i32, i32) {
    %c0_i32 = arith.constant 0 : i32
    %c0_i32_0 = arith.constant 0 : i32
    %c0_i32_1 = arith.constant 0 : i32
    return %c0_i32, %c0_i32_0 : i32, i32
  }
  func.func @transform_2(%arg0: i32) -> (i32, i32) {
    %c0_i32 = arith.constant 0 : i32
    %c0_i32_0 = arith.constant 0 : i32
    %c0_i32_1 = arith.constant 0 : i32
    return %c0_i32, %c0_i32_0 : i32, i32
  }
  func.func @transform_3(%arg0: i32) -> (i32, i32) {
    %c0_i32 = arith.constant 0 : i32
    %c0_i32_0 = arith.constant 0 : i32
    return %arg0, %c0_i32 : i32, i32
  }
}

</mosaic_0001>

<llo_original>
// kernel: tpu_custom_call.1
$region0: #{tpu_custom_call.1}
  #allocation0 [shape = 'u32[]', space=smem, size = 0x4, offset = 0x4, fixed_abs, tag = 'smem constant byte address 0x4 - core index']
  #allocation1 [shape = 'u32[72,128]{1,0:T(1,128)}', space=vmem, size = 0x9000, scoped, tag = 'internal scratch']
  %s0 = inlined_call_operand.vmem [shape: f32[8,49,32], index: 0, kind: input, shape index: {}]
  %s1 = inlined_call_operand.vmem [shape: f32[32,128], index: 1, kind: input, shape index: {}]
  %s2 = inlined_call_operand.vmem [shape: f32[1,128], index: 2, kind: input, shape index: {}]
  %s3 = inlined_call_operand.hbm [shape: f32[8,128], index: 3, kind: output, shape index: {}]
  %s4 = sld [smem:[#allocation0]]
  $region22: #{tpu_custom_call.1} parent=0
    _
  %s6 = ssub.s32 1, %s4
  %s7 = scalar_select 0, %s6, %s4
  $region1: #{tpu_custom_call.1} parent=0
    #allocation2 [shape = 'u8[4096]{0}', space=vmem, size = 0x1000, scoped, tag = 'output window, operand 0, single buffered']
    #allocation3 [shape = 's32[1]{0}', space=sflag, size = 0x4, scoped, tag = 'scoped memory for tpu_custom_call.1']
    %8 = vsyncpa [#allocation3], 0
    // Predicated region
    $region2: #{tpu_custom_call.1} parent=1 // pred_check
      _
    $region3: #{tpu_custom_call.1} parent=1 // pred_check_branch
      %10 = sbr.rel (0) target = $region5
    $region4: #{tpu_custom_call.1} parent=1 // pred_region
      _
    $region5: #{tpu_custom_call.1} parent=1 // pred_fallthru
      _
    // Predicated region
    $region6: #{tpu_custom_call.1} parent=1 // pred_check
      _
    $region7: #{tpu_custom_call.1} parent=1 // pred_check_branch
      %12 = sbr.rel (0) target = $region9
    $region8: #{tpu_custom_call.1} parent=1 // pred_region
      _
    $region9: #{tpu_custom_call.1} parent=1 // pred_fallthru
      _
    // Predicated region
    $region10: #{tpu_custom_call.1} parent=1 // pred_check
      _
    $region11: #{tpu_custom_call.1} parent=1 // pred_check_branch
      %14 = sbr.rel (0) target = $region13
    $region12: #{tpu_custom_call.1} parent=1 // pred_region
      _
    $region13: #{tpu_custom_call.1} parent=1 // pred_fallthru
      _
    %v15 = vld [vmem:[%s0] sm:$0xff]
    %v16 = vld [vmem:[%s0 + $0x8] sm:$0xff]
    %v17 = vld [vmem:[%s0 + $0x10] sm:$0xff]
    %v18 = vld [vmem:[%s0 + $0x18] sm:$0xff]
    %v19 = vld [vmem:[%s0 + $0x20] sm:$0xff]
    %v20 = vld [vmem:[%s0 + $0x28] sm:$0xff]
    %v21 = vld [vmem:[%s0 + $0x30] sm:$0x1]
    %v22 = vld [vmem:[%s0 + $0x38] sm:$0xff]
    %v23 = vld [vmem:[%s0 + $0x40] sm:$0xff]
    %v24 = vld [vmem:[%s0 + $0x48] sm:$0xff]
    %v25 = vld [vmem:[%s0 + $0x50] sm:$0xff]
    %v26 = vld [vmem:[%s0 + $0x58] sm:$0xff]
    %v27 = vld [vmem:[%s0 + $0x60] sm:$0xff]
    %v28 = vld [vmem:[%s0 + $0x68] sm:$0x1]
    %v29 = vld [vmem:[%s0 + $0x70] sm:$0xff]
    %v30 = vld [vmem:[%s0 + $0x78] sm:$0xff]
    %v31 = vld [vmem:[%s0 + $0x80] sm:$0xff]
    %v32 = vld [vmem:[%s0 + $0x88] sm:$0xff]
    %v33 = vld [vmem:[%s0 + $0x90] sm:$0xff]
    %v34 = vld [vmem:[%s0 + $0x98] sm:$0xff]
    %v35 = vld [vmem:[%s0 + $0xa0] sm:$0x1]
    %v36 = vld [vmem:[%s0 + $0xa8] sm:$0xff]
    %v37 = vld [vmem:[%s0 + $0xb0] sm:$0xff]
    %v38 = vld [vmem:[%s0 + $0xb8] sm:$0xff]
    %v39 = vld [vmem:[%s0 + $0xc0] sm:$0xff]
    %v40 = vld [vmem:[%s0 + $0xc8] sm:$0xff]
    %v41 = vld [vmem:[%s0 + $0xd0] sm:$0xff]
    %v42 = vld [vmem:[%s0 + $0xd8] sm:$0x1]
    %v43 = vld [vmem:[%s0 + $0xe0] sm:$0xff]
    %v44 = vld [vmem:[%s0 + $0xe8] sm:$0xff]
    %v45 = vld [vmem:[%s0 + $0xf0] sm:$0xff]
    %v46 = vld [vmem:[%s0 + $0xf8] sm:$0xff]
    %v47 = vld [vmem:[%s0 + $0x100] sm:$0xff]
    %v48 = vld [vmem:[%s0 + $0x108] sm:$0xff]
    %v49 = vld [vmem:[%s0 + $0x110] sm:$0x1]
    %v50 = vld [vmem:[%s0 + $0x118] sm:$0xff]
    %v51 = vld [vmem:[%s0 + $0x120] sm:$0xff]
    %v52 = vld [vmem:[%s0 + $0x128] sm:$0xff]
    %v53 = vld [vmem:[%s0 + $0x130] sm:$0xff]
    %v54 = vld [vmem:[%s0 + $0x138] sm:$0xff]
    %v55 = vld [vmem:[%s0 + $0x140] sm:$0xff]
    %v56 = vld [vmem:[%s0 + $0x148] sm:$0x1]
    %v57 = vld [vmem:[%s0 + $0x150] sm:$0xff]
    %v58 = vld [vmem:[%s0 + $0x158] sm:$0xff]
    %v59 = vld [vmem:[%s0 + $0x160] sm:$0xff]
    %v60 = vld [vmem:[%s0 + $0x168] sm:$0xff]
    %v61 = vld [vmem:[%s0 + $0x170] sm:$0xff]
    %v62 = vld [vmem:[%s0 + $0x178] sm:$0xff]
    %v63 = vld [vmem:[%s0 + $0x180] sm:$0x1]
    %v64 = vld [vmem:[%s0 + $0x188] sm:$0xff]
    %v65 = vld [vmem:[%s0 + $0x190] sm:$0xff]
    %v66 = vld [vmem:[%s0 + $0x198] sm:$0xff]
    %v67 = vld [vmem:[%s0 + $0x1a0] sm:$0xff]
    %v68 = vld [vmem:[%s0 + $0x1a8] sm:$0xff]
    %v69 = vld [vmem:[%s0 + $0x1b0] sm:$0xff]
    %v70 = vld [vmem:[%s0 + $0x1b8] sm:$0x1]
    %vm71 = vcmask 261120
    %v72 = vsel %vm71, %v15, 0.0
    %v73 = vsel %vm71, %v16, 0.0
    %v74 = vadd.f32 %v72, %v73
    %v75 = vsel %vm71, %v17, 0.0
    %v76 = vadd.f32 %v74, %v75
    %v77 = vsel %vm71, %v18, 0.0
    %v78 = vadd.f32 %v76, %v77
    %v79 = vsel %vm71, %v19, 0.0
    %v80 = vadd.f32 %v78, %v79
    %v81 = vsel %vm71, %v20, 0.0
    %v82 = vadd.f32 %v80, %v81
    %vm83 = vcmask 253952
    %v84 = vsel %vm83, %v21, 0.0
    %v85 = vadd.f32 %v82, %v84
    %v86 = vrot.slane %v85, 4
    %v87 = vadd.f32 %v85, %v86
    %v88 = vrot.slane %v87, 2
    %v89 = vadd.f32 %v87, %v88
    %v90 = vrot.slane %v89, 1
    %v91 = vadd.f32 %v89, %v90
    %v92 = vsel %vm71, %v22, 0.0
    %v93 = vsel %vm71, %v23, 0.0
    %v94 = vadd.f32 %v92, %v93
    %v95 = vsel %vm71, %v24, 0.0
    %v96 = vadd.f32 %v94, %v95
    %v97 = vsel %vm71, %v25, 0.0
    %v98 = vadd.f32 %v96, %v97
    %v99 = vsel %vm71, %v26, 0.0
    %v100 = vadd.f32 %v98, %v99
    %v101 = vsel %vm71, %v27, 0.0
    %v102 = vadd.f32 %v100, %v101
    %v103 = vsel %vm83, %v28, 0.0
    %v104 = vadd.f32 %v102, %v103
    %v105 = vrot.slane %v104, 4
    %v106 = vadd.f32 %v104, %v105
    %v107 = vrot.slane %v106, 2
    %v108 = vadd.f32 %v106, %v107
    %v109 = vrot.slane %v108, 1
    %v110 = vadd.f32 %v108, %v109
    %v111 = vsel %vm71, %v29, 0.0
    %v112 = vsel %vm71, %v30, 0.0
    %v113 = vadd.f32 %v111, %v112
    %v114 = vsel %vm71, %v31, 0.0
    %v115 = vadd.f32 %v113, %v114
    %v116 = vsel %vm71, %v32, 0.0
    %v117 = vadd.f32 %v115, %v116
    %v118 = vsel %vm71, %v33, 0.0
    %v119 = vadd.f32 %v117, %v118
    %v120 = vsel %vm71, %v34, 0.0
    %v121 = vadd.f32 %v119, %v120
    %v122 = vsel %vm83, %v35, 0.0
    %v123 = vadd.f32 %v121, %v122
    %v124 = vrot.slane %v123, 4
    %v125 = vadd.f32 %v123, %v124
    %v126 = vrot.slane %v125, 2
    %v127 = vadd.f32 %v125, %v126
    %v128 = vrot.slane %v127, 1
    %v129 = vadd.f32 %v127, %v128
    %v130 = vsel %vm71, %v36, 0.0
    %v131 = vsel %vm71, %v37, 0.0
    %v132 = vadd.f32 %v130, %v131
    %v133 = vsel %vm71, %v38, 0.0
    %v134 = vadd.f32 %v132, %v133
    %v135 = vsel %vm71, %v39, 0.0
    %v136 = vadd.f32 %v134, %v135
    %v137 = vsel %vm71, %v40, 0.0
    %v138 = vadd.f32 %v136, %v137
    %v139 = vsel %vm71, %v41, 0.0
    %v140 = vadd.f32 %v138, %v139
    %v141 = vsel %vm83, %v42, 0.0
    %v142 = vadd.f32 %v140, %v141
    %v143 = vrot.slane %v142, 4
    %v144 = vadd.f32 %v142, %v143
    %v145 = vrot.slane %v144, 2
    %v146 = vadd.f32 %v144, %v145
    %v147 = vrot.slane %v146, 1
    %v148 = vadd.f32 %v146, %v147
    %v149 = vsel %vm71, %v43, 0.0
    %v150 = vsel %vm71, %v44, 0.0
    %v151 = vadd.f32 %v149, %v150
    %v152 = vsel %vm71, %v45, 0.0
    %v153 = vadd.f32 %v151, %v152
    %v154 = vsel %vm71, %v46, 0.0
    %v155 = vadd.f32 %v153, %v154
    %v156 = vsel %vm71, %v47, 0.0
    %v157 = vadd.f32 %v155, %v156
    %v158 = vsel %vm71, %v48, 0.0
    %v159 = vadd.f32 %v157, %v158
    %v160 = vsel %vm83, %v49, 0.0
    %v161 = vadd.f32 %v159, %v160
    %v162 = vrot.slane %v161, 4
    %v163 = vadd.f32 %v161, %v162
    %v164 = vrot.slane %v163, 2
    %v165 = vadd.f32 %v163, %v164
    %v166 = vrot.slane %v165, 1
    %v167 = vadd.f32 %v165, %v166
    %v168 = vsel %vm71, %v50, 0.0
    %v169 = vsel %vm71, %v51, 0.0
    %v170 = vadd.f32 %v168, %v169
    %v171 = vsel %vm71, %v52, 0.0
    %v172 = vadd.f32 %v170, %v171
    %v173 = vsel %vm71, %v53, 0.0
    %v174 = vadd.f32 %v172, %v173
    %v175 = vsel %vm71, %v54, 0.0
    %v176 = vadd.f32 %v174, %v175
    %v177 = vsel %vm71, %v55, 0.0
    %v178 = vadd.f32 %v176, %v177
    %v179 = vsel %vm83, %v56, 0.0
    %v180 = vadd.f32 %v178, %v179
    %v181 = vrot.slane %v180, 4
    %v182 = vadd.f32 %v180, %v181
    %v183 = vrot.slane %v182, 2
    %v184 = vadd.f32 %v182, %v183
    %v185 = vrot.slane %v184, 1
    %v186 = vadd.f32 %v184, %v185
    %v187 = vsel %vm71, %v57, 0.0
    %v188 = vsel %vm71, %v58, 0.0
    %v189 = vadd.f32 %v187, %v188
    %v190 = vsel %vm71, %v59, 0.0
    %v191 = vadd.f32 %v189, %v190
    %v192 = vsel %vm71, %v60, 0.0
    %v193 = vadd.f32 %v191, %v192
    %v194 = vsel %vm71, %v61, 0.0
    %v195 = vadd.f32 %v193, %v194
    %v196 = vsel %vm71, %v62, 0.0
    %v197 = vadd.f32 %v195, %v196
    %v198 = vsel %vm83, %v63, 0.0
    %v199 = vadd.f32 %v197, %v198
    %v200 = vrot.slane %v199, 4
    %v201 = vadd.f32 %v199, %v200
    %v202 = vrot.slane %v201, 2
    %v203 = vadd.f32 %v201, %v202
    %v204 = vrot.slane %v203, 1
    %v205 = vadd.f32 %v203, %v204
    %v206 = vsel %vm71, %v64, 0.0
    %v207 = vsel %vm71, %v65, 0.0
    %v208 = vadd.f32 %v206, %v207
    %v209 = vsel %vm71, %v66, 0.0
    %v210 = vadd.f32 %v208, %v209
    %v211 = vsel %vm71, %v67, 0.0
    %v212 = vadd.f32 %v210, %v211
    %v213 = vsel %vm71, %v68, 0.0
    %v214 = vadd.f32 %v212, %v213
    %v215 = vsel %vm71, %v69, 0.0
    %v216 = vadd.f32 %v214, %v215
    %v217 = vsel %vm83, %v70, 0.0
    %v218 = vadd.f32 %v216, %v217
    %v219 = vrot.slane %v218, 4
    %v220 = vadd.f32 %v218, %v219
    %v221 = vrot.slane %v220, 2
    %v222 = vadd.f32 %v220, %v221
    %v223 = vrot.slane %v222, 1
    %v224 = vadd.f32 %v222, %v223
    %v225 = vmul.f32 %v91, 0.020408163
    %v226 = vmul.f32 %v110, 0.020408163
    %v227 = vmul.f32 %v129, 0.020408163
    %v228 = vmul.f32 %v148, 0.020408163
    %v229 = vmul.f32 %v167, 0.020408163
    %v230 = vmul.f32 %v186, 0.020408163
    %v231 = vmul.f32 %v205, 0.020408163
    %v232 = vmul.f32 %v224, 0.020408163
    %v233 = vld [vmem:[%s1] sm:$0xff]
    %v234 = vld [vmem:[%s1 + $0x8] sm:$0xff]
    %v235 = vld [vmem:[%s1 + $0x10] sm:$0xff]
    %v236 = vld [vmem:[%s1 + $0x18] sm:$0xff]
    %v237 = vld [vmem:[%s2] sm:$0x1]
    %v239 = vperm.slane %v237, 0
    %vm249 = vcmask 1041409
    %v250 = vsel %vm249, %v226, %v225
    %vm251 = vcmask 1042434
    %v252 = vsel %vm251, %v227, %v250
    %vm253 = vcmask 1043459
    %v254 = vsel %vm253, %v228, %v252
    %vm255 = vcmask 1044484
    %v256 = vsel %vm255, %v229, %v254
    %vm257 = vcmask 1045509
    %v258 = vsel %vm257, %v230, %v256
    %vm259 = vcmask 1046534
    %v260 = vsel %vm259, %v231, %v258
    %vm261 = vcmask 1047559
    %v262 = vsel %vm261, %v232, %v260
    %v263 = vsel %vm71, %v262, 0
    %265 = vmatpush.msra.mxu0 0.0
    %266 = vmatpush.msra.mxu0 0.0
    %267 = vmatpush.msra.mxu0 0.0
    %268 = vmatpush.msra.mxu0 0.0
    %269 = vmatpush.msra.mxu0 0.0
    %270 = vmatpush.msra.mxu0 0.0
    %271 = vmatpush.msra.mxu0 0.0
    %272 = vmatpush.msra.mxu0 0.0
    %273 = vmatpush.msra.mxu0 0.0
    %274 = vmatpush.msra.mxu0 0.0
    %275 = vmatpush.msra.mxu0 0.0
    %276 = vmatpush.msra.mxu0 0.0
    %277 = vmatpush.msra.mxu0 %v236
    %278 = vmatpush.msra.mxu0 %v235
    %279 = vmatpush.msra.mxu0 %v234
    %280 = vmatpush.msra.mxu0 %v233
    %281 = vmatmul.f32.gmra.mxu0 %v263
    %v282 = vpop.f32.mrf.mxu0
    %v283 = vadd.f32 %v239, %v282
    %284 = vdwg.mxu0
    %285 = vst [vmem:[#allocation2] sm:$0xff] %v283
    // Predicated region
    $region14: #{tpu_custom_call.1} parent=1 // pred_check
      _
    $region15: #{tpu_custom_call.1} parent=1 // pred_check_branch
      %287 = sbr.rel (0) target = $region17
    $region16: #{tpu_custom_call.1} parent=1 // pred_region
      %289 = vsyncadd [#allocation3], 0
      %s291 = sshll.u32 [#allocation2], 4
      %s292 = int_to_ptr.vmem [resolvable:$true] %s291
      %s293 = sshll.u32 %s3, 4
      %s294 = int_to_ptr.hbm [resolvable:$true] %s293
      %296 = dma.vmem_to_hbm [thread:$0]  %s292, 128, %s294, [#allocation3]
    $region17: #{tpu_custom_call.1} parent=1 // pred_fallthru
      _
    // Predicated region
    $region18: #{tpu_custom_call.1} parent=1 // pred_check
      _
    $region19: #{tpu_custom_call.1} parent=1 // pred_check_branch
      %298 = sbr.rel (0) target = $region21
    $region20: #{tpu_custom_call.1} parent=1 // pred_region
      %300 = dma.done [#allocation3], 128
    $region21: #{tpu_custom_call.1} parent=1 // pred_fallthru
      _
    %301 = vsyncpa [#allocation3], 1

</llo_original>
